<compile_context>
chip_gen: v7x
topology: tpu7x:2x2x1
jax: 0.10.0
libtpu: 0.0.40
codegen_flags: <defaults>
</compile_context>

<pallas_src>
import functools

import jax
import jax.numpy as jnp
from jax.experimental import pallas as pl
from jax.experimental.pallas import tpu as pltpu


def _round_up(x, m):
    return ((x + m - 1) // m) * m


def _cdiv(a, b):
    return -(-a // b)


# ----------------------------- Pallas kernel ------------------------------ #

def _fused_mlp_kernel(*refs, n_layers, negative_slope):
    """Fused MLP for one row tile: chain of (matmul + bias [+ leaky_relu]).

    refs = (x_ref, w0_ref, b0_ref, w1_ref, b1_ref, ..., o_ref)
    All intermediates live in vregs/VMEM; only the x tile is read from HBM and
    only the exact (tile_n, out_channels) tile is written back.
    """
    x_ref = refs[0]
    o_ref = refs[-1]
    wb_refs = refs[1:-1]

    h = x_ref[...]
    for i in range(n_layers):
        w = wb_refs[2 * i][...]
        b = wb_refs[2 * i + 1][...]          # (1, out_features) -> broadcasts
        # Cast activations to the weight dtype (no-op for f32; bf16 path keeps
        # the MXU at its native rate) and accumulate in f32.
        h = jnp.dot(h.astype(w.dtype), w,
                    preferred_element_type=jnp.float32) + b
        if i < n_layers - 1:                 # hidden layers get leaky_relu
            h = jnp.where(h >= 0, h, negative_slope * h)
    o_ref[...] = h.astype(o_ref.dtype)


# ------------------------------ QModel wrapper ----------------------------- #

def init_qmodel_params(key, in_channels, hidden_layers, out_channels):
    """Deterministic init mimicking nn.Linear's uniform(-1/sqrt(fan_in), ...).

    Weights are stored transposed: (in_features, out_features).
    """
    params = []
    dims = [in_channels] + list(hidden_layers) + [out_channels]
    for i in range(len(dims) - 1):
        fan_in, fan_out = dims[i], dims[i + 1]
        key, kw, kb = jax.random.split(key, 3)
        bound = 1.0 / jnp.sqrt(float(fan_in))
        w_t = jax.random.uniform(kw, (fan_in, fan_out), jnp.float32, -bound, bound)
        b = jax.random.uniform(kb, (fan_out,), jnp.float32, -bound, bound)
        params.append((w_t, b))
    return params


def qmodel_forward(params, x, in_channels, negative_slope=0.01,
                   row_tile=1024, use_bf16=False):
    """Reproduces QModel.forward with one fused Pallas kernel.

    Flatten to (-1, in_channels) (like x.view(-1, C).float()), run all hidden
    (Linear + leaky_relu) layers and the final Linear inside a single
    pallas_call, tiled over rows. Output has exact shape (n, out_channels):
    no padded writeback, no wrapper pad/slice round-trips.
    """
    out2d = x.reshape(-1, in_channels).astype(jnp.float32)
    n, k = out2d.shape
    n_layers = len(params)
    out_features = params[-1][0].shape[1]

    compute_dtype = jnp.bfloat16 if use_bf16 else jnp.float32
    if use_bf16:
        out2d = out2d.astype(compute_dtype)

    # Row tile: large enough for DMA efficiency / MXU M-dim, but capped so the
    # grid has >= ~4 steps (>= 2 per v7x TensorCore) whenever n allows it.
    # Block row dim must be a multiple of 8 (sublane); ragged last block is
    # handled by Pallas (masked output store).
    tile_n = max(8, min(row_tile, _round_up(_cdiv(n, 4), 8)))
    grid = (_cdiv(n, tile_n),)

    flat_inputs = [out2d]
    in_specs = [pl.BlockSpec((tile_n, k), lambda i: (i, 0))]
    for (w_t, b) in params:
        fi, fo = w_t.shape
        flat_inputs.append(w_t.astype(compute_dtype))
        flat_inputs.append(b.reshape(1, fo))          # bias stays f32
        # Weights/biases: full-extent blocks, constant index_map -> resident in
        # VMEM for the entire grid (no per-step re-DMA).
        in_specs.append(pl.BlockSpec((fi, fo), lambda i: (0, 0)))
        in_specs.append(pl.BlockSpec((1, fo), lambda i: (0, 0)))

    kernel = functools.partial(
        _fused_mlp_kernel, n_layers=n_layers, negative_slope=negative_slope)

    out = pl.pallas_call(
        kernel,
        out_shape=jax.ShapeDtypeStruct((n, out_features), jnp.float32),
        grid=grid,
        in_specs=in_specs,
        # Last dim (out_features) equals the full array extent -> valid block;
        # no lane padding means ~32x less output HBM traffic.
        out_specs=pl.BlockSpec((tile_n, out_features), lambda i: (i, 0)),
        compiler_params=pltpu.CompilerParams(
            dimension_semantics=("parallel",),     # v7x: shard rows over 2 TCs
            vmem_limit_bytes=32 * 1024 * 1024,     # headroom for large tiles on v5e
        ),
    )(*flat_inputs)

    return out


# -------------------------------- reference -------------------------------- #

def _reference_forward(params, x, in_channels, negative_slope=0.01):
    ref = x.reshape(-1, in_channels).astype(jnp.float32)
    for i, (w_t, b) in enumerate(params):
        ref = ref @ w_t + b
        if i < len(params) - 1:
            ref = jnp.where(ref >= 0, ref, negative_slope * ref)
    return ref


# ----------------------------------- main ----------------------------------- #

if __name__ == "__main__":
    key = jax.random.PRNGKey(0)

    # Shapes consistent with the module: flat state-vector inputs -> MLP.
    in_channels = 32
    hidden_layers = [64, 64]
    out_channels = 4

    key, kp = jax.random.split(key)
    params = init_qmodel_params(kp, in_channels, hidden_layers, out_channels)

    # Test 1: small batch (single row tile).
    key, kx = jax.random.split(key)
    x_small = jax.random.normal(kx, (8, in_channels), jnp.float32)
    out_small = jax.block_until_ready(qmodel_forward(params, x_small, in_channels))
    ref_small = _reference_forward(params, x_small, in_channels)
    assert out_small.shape == (8, out_channels)
    assert jnp.allclose(out_small, ref_small, atol=1e-5, rtol=1e-5)

    # Test 2: multi-dim input exercising the view(-1, in_channels) flatten,
    # with a ragged last row block (10 rows, tile 8 -> grid of 2, partial last).
    key, kx = jax.random.split(key)
    x_multi = jax.random.normal(kx, (2, 5, in_channels), jnp.float32)
    out_multi = jax.block_until_ready(qmodel_forward(params, x_multi, in_channels))
    ref_multi = _reference_forward(params, x_multi, in_channels)
    assert out_multi.shape == (10, out_channels)
    assert jnp.allclose(out_multi, ref_multi, atol=1e-5, rtol=1e-5)

    # Test 3: batch that exercises multiple grid steps + ragged last block
    # (n=250 -> tile 64, grid of 4, last block covers 58 rows).
    key, kx = jax.random.split(key)
    x_batch = jax.random.normal(kx, (250, in_channels), jnp.float32)
    out_batch = jax.block_until_ready(qmodel_forward(params, x_batch, in_channels))
    ref_batch = _reference_forward(params, x_batch, in_channels)
    assert out_batch.shape == (250, out_channels)
    assert jnp.allclose(out_batch, ref_batch, atol=1e-4, rtol=1e-4)

    print("KERNEL_OK")
</pallas_src>

<mosaic_0001>
module attributes {stable_mosaic.version = 11 : i64} {
  func.func @_fused_mlp_kernel(%arg0: i32, %arg1: memref<8x32xf32, #tpu.memory_space<vmem>>, %arg2: memref<32x64xf32, #tpu.memory_space<vmem>>, %arg3: memref<1x64xf32, #tpu.memory_space<vmem>>, %arg4: memref<64x64xf32, #tpu.memory_space<vmem>>, %arg5: memref<1x64xf32, #tpu.memory_space<vmem>>, %arg6: memref<64x4xf32, #tpu.memory_space<vmem>>, %arg7: memref<1x4xf32, #tpu.memory_space<vmem>>, %arg8: memref<8x4xf32, #tpu.memory_space<vmem>>) attributes {dimension_semantics = [#tpu.dimension_semantics<parallel>], iteration_bounds = array<i64: 1>, scalar_prefetch = 0 : i64, scratch_operands = 0 : i64, tpu.core_type = #tpu.core_type<tc>, window_params = [{transform_indices = @transform_0, window_bounds = array<i64: 8, 32>}, {pipeline_mode = #tpu.pipeline_mode<synchronous>, transform_indices = @transform_1, window_bounds = array<i64: 32, 64>}, {pipeline_mode = #tpu.pipeline_mode<synchronous>, transform_indices = @transform_2, window_bounds = array<i64: 1, 64>}, {pipeline_mode = #tpu.pipeline_mode<synchronous>, transform_indices = @transform_3, window_bounds = array<i64: 64, 64>}, {pipeline_mode = #tpu.pipeline_mode<synchronous>, transform_indices = @transform_4, window_bounds = array<i64: 1, 64>}, {pipeline_mode = #tpu.pipeline_mode<synchronous>, transform_indices = @transform_5, window_bounds = array<i64: 64, 4>}, {pipeline_mode = #tpu.pipeline_mode<synchronous>, transform_indices = @transform_6, window_bounds = array<i64: 1, 4>}, {transform_indices = @transform_7, window_bounds = array<i64: 8, 4>}]} {
    %c0 = arith.constant 0 : index
    %c0_0 = arith.constant 0 : index
    %0 = vector.load %arg1[%c0, %c0_0] : memref<8x32xf32, #tpu.memory_space<vmem>>, vector<8x32xf32>
    %c0_1 = arith.constant 0 : index
    %c0_2 = arith.constant 0 : index
    %1 = vector.load %arg2[%c0_1, %c0_2] : memref<32x64xf32, #tpu.memory_space<vmem>>, vector<32x64xf32>
    %c0_3 = arith.constant 0 : index
    %c0_4 = arith.constant 0 : index
    %2 = vector.load %arg3[%c0_3, %c0_4] : memref<1x64xf32, #tpu.memory_space<vmem>>, vector<1x64xf32>
    %cst = arith.constant dense<0.000000e+00> : vector<8x64xf32>
    %3 = tpu.matmul %0, %1, %cst {dimension_numbers = #tpu.dot_dimension_numbers<[1], [0], [0], [1], [0, 0, 1, 1], [], []>} : vector<8x32xf32>, vector<32x64xf32>, vector<8x64xf32> -> vector<8x64xf32>
    %4 = vector.broadcast %2 : vector<1x64xf32> to vector<8x64xf32>
    %5 = arith.addf %3, %4 : vector<8x64xf32>
    %cst_5 = arith.constant 0.000000e+00 : f32
    %6 = vector.broadcast %cst_5 : f32 to vector<8x64xf32>
    %7 = arith.cmpf oge, %5, %6 : vector<8x64xf32>
    %cst_6 = arith.constant 0.00999999977 : f32
    %8 = vector.broadcast %cst_6 : f32 to vector<8x64xf32>
    %9 = arith.mulf %8, %5 : vector<8x64xf32>
    %10 = arith.select %7, %5, %9 : vector<8x64xi1>, vector<8x64xf32>
    %c0_7 = arith.constant 0 : index
    %c0_8 = arith.constant 0 : index
    %11 = vector.load %arg4[%c0_7, %c0_8] : memref<64x64xf32, #tpu.memory_space<vmem>>, vector<64x64xf32>
    %c0_9 = arith.constant 0 : index
    %c0_10 = arith.constant 0 : index
    %12 = vector.load %arg5[%c0_9, %c0_10] : memref<1x64xf32, #tpu.memory_space<vmem>>, vector<1x64xf32>
    %cst_11 = arith.constant dense<0.000000e+00> : vector<8x64xf32>
    %13 = tpu.matmul %10, %11, %cst_11 {dimension_numbers = #tpu.dot_dimension_numbers<[1], [0], [0], [1], [0, 0, 1, 1], [], []>} : vector<8x64xf32>, vector<64x64xf32>, vector<8x64xf32> -> vector<8x64xf32>
    %14 = vector.broadcast %12 : vector<1x64xf32> to vector<8x64xf32>
    %15 = arith.addf %13, %14 : vector<8x64xf32>
    %cst_12 = arith.constant 0.000000e+00 : f32
    %16 = vector.broadcast %cst_12 : f32 to vector<8x64xf32>
    %17 = arith.cmpf oge, %15, %16 : vector<8x64xf32>
    %cst_13 = arith.constant 0.00999999977 : f32
    %18 = vector.broadcast %cst_13 : f32 to vector<8x64xf32>
    %19 = arith.mulf %18, %15 : vector<8x64xf32>
    %20 = arith.select %17, %15, %19 : vector<8x64xi1>, vector<8x64xf32>
    %c0_14 = arith.constant 0 : index
    %c0_15 = arith.constant 0 : index
    %21 = vector.load %arg6[%c0_14, %c0_15] : memref<64x4xf32, #tpu.memory_space<vmem>>, vector<64x4xf32>
    %c0_16 = arith.constant 0 : index
    %c0_17 = arith.constant 0 : index
    %22 = vector.load %arg7[%c0_16, %c0_17] : memref<1x4xf32, #tpu.memory_space<vmem>>, vector<1x4xf32>
    %cst_18 = arith.constant dense<0.000000e+00> : vector<8x4xf32>
    %23 = tpu.matmul %20, %21, %cst_18 {dimension_numbers = #tpu.dot_dimension_numbers<[1], [0], [0], [1], [0, 0, 1, 1], [], []>} : vector<8x64xf32>, vector<64x4xf32>, vector<8x4xf32> -> vector<8x4xf32>
    %24 = vector.broadcast %22 : vector<1x4xf32> to vector<8x4xf32>
    %25 = arith.addf %23, %24 : vector<8x4xf32>
    %c0_19 = arith.constant 0 : index
    %c0_20 = arith.constant 0 : index
    %26 = vector.load %arg8[%c0_19, %c0_20] : memref<8x4xf32, #tpu.memory_space<vmem>>, vector<8x4xf32>
    tpu.vector_store %arg8[%c0_19, %c0_20], %25 {strides = array<i32>} : memref<8x4xf32, #tpu.memory_space<vmem>>, vector<8x4xf32>,
    return
  }
  func.func @transform_0(%arg0: i32) -> (i32, i32) {
    %c0_i32 = arith.constant 0 : i32
    %c0_i32_0 = arith.constant 0 : i32
    return %arg0, %c0_i32 : i32, i32
  }
  func.func @transform_1(%arg0: i32) -> (i32, i32) {
    %c0_i32 = arith.constant 0 : i32
    %c0_i32_0 = arith.constant 0 : i32
    %c0_i32_1 = arith.constant 0 : i32
    return %c0_i32, %c0_i32_0 : i32, i32
  }
  func.func @transform_2(%arg0: i32) -> (i32, i32) {
    %c0_i32 = arith.constant 0 : i32
    %c0_i32_0 = arith.constant 0 : i32
    %c0_i32_1 = arith.constant 0 : i32
    return %c0_i32, %c0_i32_0 : i32, i32
  }
  func.func @transform_3(%arg0: i32) -> (i32, i32) {
    %c0_i32 = arith.constant 0 : i32
    %c0_i32_0 = arith.constant 0 : i32
    %c0_i32_1 = arith.constant 0 : i32
    return %c0_i32, %c0_i32_0 : i32, i32
  }
  func.func @transform_4(%arg0: i32) -> (i32, i32) {
    %c0_i32 = arith.constant 0 : i32
    %c0_i32_0 = arith.constant 0 : i32
    %c0_i32_1 = arith.constant 0 : i32
    return %c0_i32, %c0_i32_0 : i32, i32
  }
  func.func @transform_5(%arg0: i32) -> (i32, i32) {
    %c0_i32 = arith.constant 0 : i32
    %c0_i32_0 = arith.constant 0 : i32
    %c0_i32_1 = arith.constant 0 : i32
    return %c0_i32, %c0_i32_0 : i32, i32
  }
  func.func @transform_6(%arg0: i32) -> (i32, i32) {
    %c0_i32 = arith.constant 0 : i32
    %c0_i32_0 = arith.constant 0 : i32
    %c0_i32_1 = arith.constant 0 : i32
    return %c0_i32, %c0_i32_0 : i32, i32
  }
  func.func @transform_7(%arg0: i32) -> (i32, i32) {
    %c0_i32 = arith.constant 0 : i32
    %c0_i32_0 = arith.constant 0 : i32
    return %arg0, %c0_i32 : i32, i32
  }
}

</mosaic_0001>

<llo_original>
// kernel: tpu_custom_call.1
$region0: #{tpu_custom_call.1}
  #allocation0 [shape = 'u32[]', space=smem, size = 0x4, offset = 0x4, fixed_abs, tag = 'smem constant byte address 0x4 - core index']
  #allocation1 [shape = 'u32[144,128]{1,0:T(1,128)}', space=vmem, size = 0x12000, scoped, tag = 'internal scratch']
  %s0 = inlined_call_operand.vmem [shape: f32[8,32], index: 0, kind: input, shape index: {}]
  %s1 = inlined_call_operand.hbm [shape: f32[32,64], index: 1, kind: input, shape index: {}]
  %s2 = inlined_call_operand.vmem [shape: f32[1,64], index: 2, kind: input, shape index: {}]
  %s3 = inlined_call_operand.vmem [shape: f32[64,64], index: 3, kind: input, shape index: {}]
  %s4 = inlined_call_operand.vmem [shape: f32[1,64], index: 4, kind: input, shape index: {}]
  %s5 = inlined_call_operand.vmem [shape: f32[64,4], index: 5, kind: input, shape index: {}]
  %s6 = inlined_call_operand.vmem [shape: f32[1,4], index: 6, kind: input, shape index: {}]
  %s7 = inlined_call_operand.vmem [shape: f32[8,4], index: 7, kind: output, shape index: {}]
  %s8 = sld [smem:[#allocation0]]
  $region42: #{tpu_custom_call.1} parent=0
    _
  %s10 = ssub.s32 1, %s8
  %s11 = scalar_select 0, %s10, %s8
  $region1: #{tpu_custom_call.1} parent=0
    #allocation2 [shape = 'u8[16384]{0}', space=vmem, size = 0x4000, scoped, tag = 'input window, operand 1, single buffered']
    #allocation3 [shape = 's32[1]{0}', space=sflag, size = 0x4, scoped, tag = 'scoped memory for tpu_custom_call.1']
    %12 = vsyncpa [#allocation3], 0
    // Predicated region
    $region2: #{tpu_custom_call.1} parent=1 // pred_check
      _
    $region3: #{tpu_custom_call.1} parent=1 // pred_check_branch
      %14 = sbr.rel (0) target = $region5
    $region4: #{tpu_custom_call.1} parent=1 // pred_region
      _
    $region5: #{tpu_custom_call.1} parent=1 // pred_fallthru
      _
    // Predicated region
    $region6: #{tpu_custom_call.1} parent=1 // pred_check
      _
    $region7: #{tpu_custom_call.1} parent=1 // pred_check_branch
      %16 = sbr.rel (0) target = $region9
    $region8: #{tpu_custom_call.1} parent=1 // pred_region
      %s18 = ssub.s32 512, 512
      %19 = vsyncadd [#allocation3], %s18
      %s20 = sshll.u32 [#allocation2], 4
      %s21 = int_to_ptr.vmem [resolvable:$true] %s20
      %26 = dma.hbm_to_vmem [thread:$0]  %s1, 512, %s21, [#allocation3], 128, 128, 8
    $region9: #{tpu_custom_call.1} parent=1 // pred_fallthru
      _
    // Predicated region
    $region10: #{tpu_custom_call.1} parent=1 // pred_check
      _
    $region11: #{tpu_custom_call.1} parent=1 // pred_check_branch
      %28 = sbr.rel (0) target = $region13
    $region12: #{tpu_custom_call.1} parent=1 // pred_region
      _
    $region13: #{tpu_custom_call.1} parent=1 // pred_fallthru
      _
    // Predicated region
    $region14: #{tpu_custom_call.1} parent=1 // pred_check
      _
    $region15: #{tpu_custom_call.1} parent=1 // pred_check_branch
      %30 = sbr.rel (0) target = $region17
    $region16: #{tpu_custom_call.1} parent=1 // pred_region
      _
    $region17: #{tpu_custom_call.1} parent=1 // pred_fallthru
      _
    // Predicated region
    $region18: #{tpu_custom_call.1} parent=1 // pred_check
      _
    $region19: #{tpu_custom_call.1} parent=1 // pred_check_branch
      %32 = sbr.rel (0) target = $region21
    $region20: #{tpu_custom_call.1} parent=1 // pred_region
      _
    $region21: #{tpu_custom_call.1} parent=1 // pred_fallthru
      _
    // Predicated region
    $region22: #{tpu_custom_call.1} parent=1 // pred_check
      _
    $region23: #{tpu_custom_call.1} parent=1 // pred_check_branch
      %34 = sbr.rel (0) target = $region25
    $region24: #{tpu_custom_call.1} parent=1 // pred_region
      _
    $region25: #{tpu_custom_call.1} parent=1 // pred_fallthru
      _
    // Predicated region
    $region26: #{tpu_custom_call.1} parent=1 // pred_check
      _
    $region27: #{tpu_custom_call.1} parent=1 // pred_check_branch
      %36 = sbr.rel (0) target = $region29
    $region28: #{tpu_custom_call.1} parent=1 // pred_region
      _
    $region29: #{tpu_custom_call.1} parent=1 // pred_fallthru
      _
    // Predicated region
    $region30: #{tpu_custom_call.1} parent=1 // pred_check
      _
    $region31: #{tpu_custom_call.1} parent=1 // pred_check_branch
      %38 = sbr.rel (0) target = $region33
    $region32: #{tpu_custom_call.1} parent=1 // pred_region
      %39 = dma.done [#allocation3], 512
    $region33: #{tpu_custom_call.1} parent=1 // pred_fallthru
      _
    %v40 = vld [vmem:[%s0] sm:$0xff]
    %v41 = vld [vmem:[#allocation2] sm:$0xff]
    %v42 = vld [vmem:[#allocation2 + $0x8] sm:$0xff]
    %v43 = vld [vmem:[#allocation2 + $0x10] sm:$0xff]
    %v44 = vld [vmem:[#allocation2 + $0x18] sm:$0xff]
    %v45 = vld [vmem:[%s2] sm:$0x1]
    %v47 = vlaneseq
    %v48 = vshrl.u32 %v47, 7
    %v49 = vsub.s32 0, %v48
    %v50 = vrot.slane %v45, %v49
    %vm52 = vcmask 261120
    %v54 = vsel %vm52, %v40, 0
    %56 = vmatprep.subr.mxu0 0.0
    %57 = vmatpush1.msra.mxu0 %v41
    %58 = vmatprep.subr.mxu0 0.0
    %59 = vmatpush1.msra.mxu0 %v42
    %60 = vmatprep.subr.mxu0 0.0
    %61 = vmatpush1.msra.mxu0 %v43
    %62 = vmatprep.subr.mxu0 0.0
    %63 = vmatpush1.msra.mxu0 %v44
    %64 = vmatprep.subr.mxu0 0.0
    %65 = vmatpush1.msra.mxu0 0.0
    %66 = vmatprep.subr.mxu0 0.0
    %67 = vmatpush1.msra.mxu0 0.0
    %68 = vmatprep.subr.mxu0 0.0
    %69 = vmatpush1.msra.mxu0 0.0
    %70 = vmatprep.subr.mxu0 0.0
    %71 = vmatpush1.msra.mxu0 0.0
    %72 = vmatprep.subr.mxu0 0.0
    %73 = vmatpush1.msra.mxu0 0.0
    %74 = vmatprep.subr.mxu0 0.0
    %75 = vmatpush1.msra.mxu0 0.0
    %76 = vmatprep.subr.mxu0 0.0
    %77 = vmatpush1.msra.mxu0 0.0
    %78 = vmatprep.subr.mxu0 0.0
    %79 = vmatpush1.msra.mxu0 0.0
    %80 = vmatprep.subr.mxu0 0.0
    %81 = vmatpush1.msra.mxu0 0.0
    %82 = vmatprep.subr.mxu0 0.0
    %83 = vmatpush1.msra.mxu0 0.0
    %84 = vmatprep.subr.mxu0 0.0
    %85 = vmatpush1.msra.mxu0 0.0
    %86 = vmatprep.subr.mxu0 0.0
    %87 = vmatpush1.msra.mxu0 0.0
    %88 = vmatprep.subr.mxu0 0.0
    %89 = vmatpush1.msra.mxu0 0.0
    %90 = vmatprep.subr.mxu0 0.0
    %91 = vmatpush1.msra.mxu0 0.0
    %92 = vmatprep.subr.mxu0 0.0
    %93 = vmatpush1.msra.mxu0 0.0
    %94 = vmatprep.subr.mxu0 0.0
    %95 = vmatpush1.msra.mxu0 0.0
    %96 = vmatprep.subr.mxu0 0.0
    %97 = vmatpush1.msra.mxu0 0.0
    %98 = vmatprep.subr.mxu0 0.0
    %99 = vmatpush1.msra.mxu0 0.0
    %100 = vmatprep.subr.mxu0 0.0
    %101 = vmatpush1.msra.mxu0 0.0
    %102 = vmatprep.subr.mxu0 0.0
    %103 = vmatpush1.msra.mxu0 0.0
    %104 = vmatprep.subr.mxu0 0.0
    %105 = vmatpush1.msra.mxu0 0.0
    %106 = vmatprep.subr.mxu0 0.0
    %107 = vmatpush1.msra.mxu0 0.0
    %108 = vmatprep.subr.mxu0 0.0
    %109 = vmatpush1.msra.mxu0 0.0
    %110 = vmatprep.subr.mxu0 0.0
    %111 = vmatpush1.msra.mxu0 0.0
    %112 = vmatprep.subr.mxu0 0.0
    %113 = vmatpush1.msra.mxu0 0.0
    %114 = vmatprep.subr.mxu0 0.0
    %115 = vmatpush1.msra.mxu0 0.0
    %116 = vmatprep.subr.mxu0 0.0
    %117 = vmatpush1.msra.mxu0 0.0
    %118 = vmatprep.subr.mxu0 0.0
    %119 = vmatpush1.msra.mxu0 0.0
    %120 = vmatprep.mubr.f32.mxu0 0.0
    %121 = vmatmul.mubr.f32.gmra.mrb[0].mxu0 %v54
    %v122 = vpop.f32.mrb[0].mxu0
    %v123 = vadd.f32 %v50, %v122
    %v124 = vpop.f32.mrb[0].mxu0
    %125 = vdwg.mxu0
    %vm126 = vcmp.ge.f32.partialorder %v123, 0.0
    %v127 = vmul.f32 %v123, 0.01
    %v128 = vsel %vm126, %v123, %v127
    %v129 = vld [vmem:[%s3] sm:$0xff]
    %v130 = vld [vmem:[%s3 + $0x8] sm:$0xff]
    %v131 = vld [vmem:[%s3 + $0x10] sm:$0xff]
    %v132 = vld [vmem:[%s3 + $0x18] sm:$0xff]
    %v133 = vld [vmem:[%s3 + $0x20] sm:$0xff]
    %v134 = vld [vmem:[%s3 + $0x28] sm:$0xff]
    %v135 = vld [vmem:[%s3 + $0x30] sm:$0xff]
    %v136 = vld [vmem:[%s3 + $0x38] sm:$0xff]
    %v137 = vld [vmem:[%s4] sm:$0x1]
    %v139 = vlaneseq
    %v140 = vshrl.u32 %v139, 7
    %v141 = vsub.s32 0, %v140
    %v142 = vrot.slane %v137, %v141
    %vm144 = vcmask 523264
    %v146 = vsel %vm144, %v128, 0
    %148 = vmatprep.subr.mxu0 0.0
    %149 = vmatpush1.msra.mxu0 %v129
    %150 = vmatprep.subr.mxu0 0.0
    %151 = vmatpush1.msra.mxu0 %v130
    %152 = vmatprep.subr.mxu0 0.0
    %153 = vmatpush1.msra.mxu0 %v131
    %154 = vmatprep.subr.mxu0 0.0
    %155 = vmatpush1.msra.mxu0 %v132
    %156 = vmatprep.subr.mxu0 0.0
    %157 = vmatpush1.msra.mxu0 %v133
    %158 = vmatprep.subr.mxu0 0.0
    %159 = vmatpush1.msra.mxu0 %v134
    %160 = vmatprep.subr.mxu0 0.0
    %161 = vmatpush1.msra.mxu0 %v135
    %162 = vmatprep.subr.mxu0 0.0
    %163 = vmatpush1.msra.mxu0 %v136
    %164 = vmatprep.subr.mxu0 0.0
    %165 = vmatpush1.msra.mxu0 0.0
    %166 = vmatprep.subr.mxu0 0.0
    %167 = vmatpush1.msra.mxu0 0.0
    %168 = vmatprep.subr.mxu0 0.0
    %169 = vmatpush1.msra.mxu0 0.0
    %170 = vmatprep.subr.mxu0 0.0
    %171 = vmatpush1.msra.mxu0 0.0
    %172 = vmatprep.subr.mxu0 0.0
    %173 = vmatpush1.msra.mxu0 0.0
    %174 = vmatprep.subr.mxu0 0.0
    %175 = vmatpush1.msra.mxu0 0.0
    %176 = vmatprep.subr.mxu0 0.0
    %177 = vmatpush1.msra.mxu0 0.0
    %178 = vmatprep.subr.mxu0 0.0
    %179 = vmatpush1.msra.mxu0 0.0
    %180 = vmatprep.subr.mxu0 0.0
    %181 = vmatpush1.msra.mxu0 0.0
    %182 = vmatprep.subr.mxu0 0.0
    %183 = vmatpush1.msra.mxu0 0.0
    %184 = vmatprep.subr.mxu0 0.0
    %185 = vmatpush1.msra.mxu0 0.0
    %186 = vmatprep.subr.mxu0 0.0
    %187 = vmatpush1.msra.mxu0 0.0
    %188 = vmatprep.subr.mxu0 0.0
    %189 = vmatpush1.msra.mxu0 0.0
    %190 = vmatprep.subr.mxu0 0.0
    %191 = vmatpush1.msra.mxu0 0.0
    %192 = vmatprep.subr.mxu0 0.0
    %193 = vmatpush1.msra.mxu0 0.0
    %194 = vmatprep.subr.mxu0 0.0
    %195 = vmatpush1.msra.mxu0 0.0
    %196 = vmatprep.subr.mxu0 0.0
    %197 = vmatpush1.msra.mxu0 0.0
    %198 = vmatprep.subr.mxu0 0.0
    %199 = vmatpush1.msra.mxu0 0.0
    %200 = vmatprep.subr.mxu0 0.0
    %201 = vmatpush1.msra.mxu0 0.0
    %202 = vmatprep.subr.mxu0 0.0
    %203 = vmatpush1.msra.mxu0 0.0
    %204 = vmatprep.subr.mxu0 0.0
    %205 = vmatpush1.msra.mxu0 0.0
    %206 = vmatprep.subr.mxu0 0.0
    %207 = vmatpush1.msra.mxu0 0.0
    %208 = vmatprep.subr.mxu0 0.0
    %209 = vmatpush1.msra.mxu0 0.0
    %210 = vmatprep.subr.mxu0 0.0
    %211 = vmatpush1.msra.mxu0 0.0
    %212 = vmatprep.mubr.f32.mxu0 0.0
    %213 = vmatmul.mubr.f32.gmra.mrb[0].mxu0 %v146
    %v214 = vpop.f32.mrb[0].mxu0
    %v215 = vadd.f32 %v142, %v214
    %v216 = vpop.f32.mrb[0].mxu0
    %217 = vdwg.mxu0
    %vm218 = vcmp.ge.f32.partialorder %v215, 0.0
    %v219 = vmul.f32 %v215, 0.01
    %v220 = vsel %vm218, %v215, %v219
    %v221 = vld [vmem:[%s5] sm:$0xff]
    %v222 = vld [vmem:[%s5 + $0x8] sm:$0xff]
    %v223 = vld [vmem:[%s5 + $0x10] sm:$0xff]
    %v224 = vld [vmem:[%s5 + $0x18] sm:$0xff]
    %v225 = vld [vmem:[%s5 + $0x20] sm:$0xff]
    %v226 = vld [vmem:[%s5 + $0x28] sm:$0xff]
    %v227 = vld [vmem:[%s5 + $0x30] sm:$0xff]
    %v228 = vld [vmem:[%s5 + $0x38] sm:$0xff]
    %v229 = vld [vmem:[%s6] sm:$0x1]
    %v231 = vlaneseq
    %v232 = vshrl.u32 %v231, 7
    %v233 = vsub.s32 0, %v232
    %v234 = vrot.slane %v229, %v233
    %v237 = vsel %vm144, %v220, 0
    %239 = vmatprep.subr.mxu0 0.0
    %240 = vmatpush1.msra.mxu0 %v221
    %241 = vmatprep.subr.mxu0 0.0
    %242 = vmatpush1.msra.mxu0 %v222
    %243 = vmatprep.subr.mxu0 0.0
    %244 = vmatpush1.msra.mxu0 %v223
    %245 = vmatprep.subr.mxu0 0.0
    %246 = vmatpush1.msra.mxu0 %v224
    %247 = vmatprep.subr.mxu0 0.0
    %248 = vmatpush1.msra.mxu0 %v225
    %249 = vmatprep.subr.mxu0 0.0
    %250 = vmatpush1.msra.mxu0 %v226
    %251 = vmatprep.subr.mxu0 0.0
    %252 = vmatpush1.msra.mxu0 %v227
    %253 = vmatprep.subr.mxu0 0.0
    %254 = vmatpush1.msra.mxu0 %v228
    %255 = vmatprep.subr.mxu0 0.0
    %256 = vmatpush1.msra.mxu0 0.0
    %257 = vmatprep.subr.mxu0 0.0
    %258 = vmatpush1.msra.mxu0 0.0
    %259 = vmatprep.subr.mxu0 0.0
    %260 = vmatpush1.msra.mxu0 0.0
    %261 = vmatprep.subr.mxu0 0.0
    %262 = vmatpush1.msra.mxu0 0.0
    %263 = vmatprep.subr.mxu0 0.0
    %264 = vmatpush1.msra.mxu0 0.0
    %265 = vmatprep.subr.mxu0 0.0
    %266 = vmatpush1.msra.mxu0 0.0
    %267 = vmatprep.subr.mxu0 0.0
    %268 = vmatpush1.msra.mxu0 0.0
    %269 = vmatprep.subr.mxu0 0.0
    %270 = vmatpush1.msra.mxu0 0.0
    %271 = vmatprep.subr.mxu0 0.0
    %272 = vmatpush1.msra.mxu0 0.0
    %273 = vmatprep.subr.mxu0 0.0
    %274 = vmatpush1.msra.mxu0 0.0
    %275 = vmatprep.subr.mxu0 0.0
    %276 = vmatpush1.msra.mxu0 0.0
    %277 = vmatprep.subr.mxu0 0.0
    %278 = vmatpush1.msra.mxu0 0.0
    %279 = vmatprep.subr.mxu0 0.0
    %280 = vmatpush1.msra.mxu0 0.0
    %281 = vmatprep.subr.mxu0 0.0
    %282 = vmatpush1.msra.mxu0 0.0
    %283 = vmatprep.subr.mxu0 0.0
    %284 = vmatpush1.msra.mxu0 0.0
    %285 = vmatprep.subr.mxu0 0.0
    %286 = vmatpush1.msra.mxu0 0.0
    %287 = vmatprep.subr.mxu0 0.0
    %288 = vmatpush1.msra.mxu0 0.0
    %289 = vmatprep.subr.mxu0 0.0
    %290 = vmatpush1.msra.mxu0 0.0
    %291 = vmatprep.subr.mxu0 0.0
    %292 = vmatpush1.msra.mxu0 0.0
    %293 = vmatprep.subr.mxu0 0.0
    %294 = vmatpush1.msra.mxu0 0.0
    %295 = vmatprep.subr.mxu0 0.0
    %296 = vmatpush1.msra.mxu0 0.0
    %297 = vmatprep.subr.mxu0 0.0
    %298 = vmatpush1.msra.mxu0 0.0
    %299 = vmatprep.subr.mxu0 0.0
    %300 = vmatpush1.msra.mxu0 0.0
    %301 = vmatprep.subr.mxu0 0.0
    %302 = vmatpush1.msra.mxu0 0.0
    %303 = vmatprep.mubr.f32.mxu0 0.0
    %304 = vmatmul.mubr.f32.gmra.mrb[0].mxu0 %v237
    %v305 = vpop.f32.mrb[0].mxu0
    %v306 = vadd.f32 %v234, %v305
    %v307 = vpop.f32.mrb[0].mxu0
    %308 = vdwg.mxu0
    %vm309 = vcmask 31744
    %310 = vst.msk [vmem:[%s7] sm:$0xff] %vm309, %v306
    // Predicated region
    $region34: #{tpu_custom_call.1} parent=1 // pred_check
      _
    $region35: #{tpu_custom_call.1} parent=1 // pred_check_branch
      %312 = sbr.rel (0) target = $region37
    $region36: #{tpu_custom_call.1} parent=1 // pred_region
      _
    $region37: #{tpu_custom_call.1} parent=1 // pred_fallthru
      _
    // Predicated region
    $region38: #{tpu_custom_call.1} parent=1 // pred_check
      _
    $region39: #{tpu_custom_call.1} parent=1 // pred_check_branch
      %314 = sbr.rel (0) target = $region41
    $region40: #{tpu_custom_call.1} parent=1 // pred_region
      _
    $region41: #{tpu_custom_call.1} parent=1 // pred_fallthru
      _
    %315 = vsyncpa [#allocation3], 1

</llo_original>
